<compile_context>
chip_gen: v7x
topology: tpu7x:2x2x1
jax: 0.10.0
libtpu: 0.0.40
codegen_flags: <defaults>
</compile_context>

<pallas_src>
import jax
import jax.numpy as jnp
from jax.experimental import pallas as pl
from jax.experimental.pallas import tpu as pltpu


def _round_up(a, b):
    return ((a + b - 1) // b) * b


def _gnn_encoder_kernel(adj_ref, xw_ref, bg_ref, wh_ref, bh_ref, out_ref, acc_ref):
    """One (row-tile, k-tile) step of the fused GCN + S/P heads.

    adj_ref: [TB, TK]          dense adjacency tile (compute dtype)
    xw_ref:  [TK, H]           precomputed x @ W_gcn tile (compute dtype)
    bg_ref:  [1, H]            GCN bias (f32)
    wh_ref:  [H, Cp]           fused [W_S | W_P], lane-padded (compute dtype)
    bh_ref:  [1, Cp]           fused [b_S | b_P], lane-padded (f32)
    out_ref: [TB, Cp]          concat(common, private), lane-padded (f32)
    acc_ref: [TB, H] f32 VMEM  running adj @ xW accumulator
    """
    k = pl.program_id(1)

    @pl.when(k == 0)
    def _():
        acc_ref[...] = jnp.zeros_like(acc_ref)

    acc_ref[...] += jnp.dot(adj_ref[...], xw_ref[...],
                            preferred_element_type=jnp.float32)

    @pl.when(k == pl.num_programs(1) - 1)
    def _():
        h = jnp.maximum(acc_ref[...] + bg_ref[...], 0.0)  # GCN bias + ReLU
        out_ref[...] = (
            jnp.dot(h.astype(wh_ref.dtype), wh_ref[...],
                    preferred_element_type=jnp.float32)
            + bh_ref[...]
        ).astype(out_ref.dtype)


def gnn_encoder_forward(x, adj, wg, bg, head_w, head_b, c_dim, p_dim, *,
                        row_block=256, k_block=512,
                        compute_dtype=jnp.bfloat16):
    """x: [N, F] node features, adj: [N, N] dense (normalized) adjacency.

    head_w / head_b are the pre-fused, 128-lane-padded [W_S | W_P] / [b_S | b_P].
    """
    n, _ = x.shape
    hid = wg.shape[1]
    out_padded = head_w.shape[1]
    out_dim = c_dim + p_dim

    # Feature projection done once here (O(N*F*H)); the kernel then streams the
    # much cheaper adj @ xW (O(N^2*H) instead of O(N^2*F) for F >> H).
    xw = jnp.dot(x, wg, preferred_element_type=jnp.float32)

    # Tile sizes: multiples of (8, 128); 256-wide to match v6e/v7x MXU.
    tb = min(row_block, _round_up(n, 8))
    tk = min(k_block, _round_up(n, 128))
    n_rows = _round_up(n, tb)
    n_k = _round_up(n, tk)

    # Zero-pad so every (row, k) block is fully in-bounds: padded k-columns of
    # adj / rows of xW are zero and do not perturb the accumulation; padded
    # output rows are sliced away below.
    adj_p = adj
    if (n_rows, n_k) != (n, n):
        adj_p = jnp.pad(adj, ((0, n_rows - n), (0, n_k - n)))
    xw_p = xw if n_k == n else jnp.pad(xw, ((0, n_k - n), (0, 0)))

    adj_p = adj_p.astype(compute_dtype)
    xw_p = xw_p.astype(compute_dtype)
    wh = head_w.astype(compute_dtype)

    grid = (n_rows // tb, n_k // tk)
    isz = jnp.dtype(compute_dtype).itemsize

    # Shape-derived VMEM budget (double buffers + scratch), with headroom,
    # capped safely below v7x's 64 MiB physical VMEM.
    vmem_bytes = (2 * tb * tk * isz               # adj tiles
                  + 2 * tk * hid * isz            # xW tiles
                  + 2 * hid * out_padded * isz    # fused head weights
                  + 2 * (hid + out_padded) * 4    # biases
                  + tb * hid * 4                  # f32 accumulator scratch
                  + 2 * tb * out_padded * 4)      # output tiles
    vmem_limit = max(16 * 1024 * 1024,
                     min(int(vmem_bytes * 1.5) + (1 << 20), 96 * 1024 * 1024))

    flops = 2 * (n_rows * n_k * hid + n_rows * hid * out_padded)
    bytes_accessed = (isz * (n_rows * n_k + n_k * hid + hid * out_padded)
                      + 4 * (hid + out_padded + n_rows * out_padded))

    out = pl.pallas_call(
        _gnn_encoder_kernel,
        out_shape=jax.ShapeDtypeStruct((n_rows, out_padded), jnp.float32),
        grid_spec=pltpu.PrefetchScalarGridSpec(
            num_scalar_prefetch=0,
            grid=grid,
            in_specs=[
                pl.BlockSpec((tb, tk), lambda i, k: (i, k)),           # adj tile
                pl.BlockSpec((tk, hid), lambda i, k: (k, 0)),          # xW tile
                pl.BlockSpec((1, hid), lambda i, k: (0, 0)),           # b_gcn
                pl.BlockSpec((hid, out_padded), lambda i, k: (0, 0)),  # [W_S|W_P]
                pl.BlockSpec((1, out_padded), lambda i, k: (0, 0)),    # [b_S|b_P]
            ],
            out_specs=pl.BlockSpec((tb, out_padded), lambda i, k: (i, 0)),
            scratch_shapes=[pltpu.VMEM((tb, hid), jnp.float32)],
        ),
        compiler_params=pltpu.CompilerParams(
            dimension_semantics=("parallel", "arbitrary"),
            vmem_limit_bytes=vmem_limit,
        ),
        cost_estimate=pl.CostEstimate(
            flops=flops, transcendentals=0, bytes_accessed=bytes_accessed),
    )(adj_p, xw_p, bg, wh, head_b)

    common = out[:n, :c_dim]
    private = out[:n, c_dim:out_dim]
    return common, private


def _linear_init(key, fan_in, fan_out):
    """nn.Linear-style init: U(-1/sqrt(fan_in), 1/sqrt(fan_in))."""
    kw, kb = jax.random.split(key)
    bound = 1.0 / jnp.sqrt(jnp.float32(fan_in))
    w = jax.random.uniform(kw, (fan_in, fan_out), minval=-bound, maxval=bound,
                           dtype=jnp.float32)
    b = jax.random.uniform(kb, (1, fan_out), minval=-bound, maxval=bound,
                           dtype=jnp.float32)
    return w, b


class GNNEncoder:
    """JAX/Pallas equivalent of the PyTorch GNNEncoder (GCN + S/P heads)."""

    def __init__(self, ft_size, hid_units, c_dim, p_dim, key=None,
                 compute_dtype=jnp.bfloat16):
        if key is None:
            key = jax.random.PRNGKey(0)
        k_g, k_s, k_p = jax.random.split(key, 3)
        # GCN layer: weight + zero bias (DMG GCN fills its bias with 0).
        self.wg, _ = _linear_init(k_g, ft_size, hid_units)
        self.bg = jnp.zeros((1, hid_units), jnp.float32)
        # Heads S (common) and P (private).
        self.ws, self.bs = _linear_init(k_s, hid_units, c_dim)
        self.wp, self.bp = _linear_init(k_p, hid_units, p_dim)
        self.c_dim, self.p_dim = c_dim, p_dim
        self.compute_dtype = compute_dtype

        # Fuse + lane-pad the two heads ONCE at init so the kernel does a
        # single lane-dense store and no per-call concat/pad is needed.
        head_w = jnp.concatenate([self.ws, self.wp], axis=1)
        head_b = jnp.concatenate([self.bs, self.bp], axis=1)
        pad = (-(c_dim + p_dim)) % 128
        if pad:
            head_w = jnp.pad(head_w, ((0, 0), (0, pad)))  # zero-padded columns
            head_b = jnp.pad(head_b, ((0, 0), (0, pad)))
        self.head_w = head_w
        self.head_b = head_b

    def __call__(self, x, adj):
        # TODO(synk): training-mode dropout (args.dropout) is identity in
        # forward/eval mode and is omitted; training would need a custom_vjp
        # as this is a forward-only kernel.
        return gnn_encoder_forward(x, adj, self.wg, self.bg,
                                   self.head_w, self.head_b,
                                   self.c_dim, self.p_dim,
                                   compute_dtype=self.compute_dtype)


if __name__ == "__main__":
    # Small shapes consistent with the module's forward.
    n_nodes = 256
    ft_size = 128
    hid_units = 128
    c_dim = 64
    p_dim = 64

    key = jax.random.PRNGKey(0)
    kx, ka, kparams = jax.random.split(key, 3)
    x = jax.random.normal(kx, (n_nodes, ft_size), dtype=jnp.float32)

    # Row-normalized random adjacency with self-loops (typical GCN input).
    a = (jax.random.uniform(ka, (n_nodes, n_nodes)) < 0.05).astype(jnp.float32)
    a = a + jnp.eye(n_nodes, dtype=jnp.float32)
    adj = a / jnp.sum(a, axis=1, keepdims=True)

    model = GNNEncoder(ft_size, hid_units, c_dim, p_dim, key=kparams)

    # Pure-JAX reference matching the PyTorch op order: spmm(adj, x @ W) + b.
    h_ref = jnp.maximum(adj @ (x @ model.wg) + model.bg, 0.0)
    ref_common = h_ref @ model.ws + model.bs
    ref_private = h_ref @ model.wp + model.bp

    # f32 path: tight correctness check against the reference.
    common32, private32 = gnn_encoder_forward(
        x, adj, model.wg, model.bg, model.head_w, model.head_b,
        model.c_dim, model.p_dim, compute_dtype=jnp.float32)
    common32 = jax.block_until_ready(common32)
    private32 = jax.block_until_ready(private32)
    assert common32.shape == (n_nodes, c_dim)
    assert private32.shape == (n_nodes, p_dim)
    assert jnp.allclose(common32, ref_common, atol=1e-4, rtol=1e-4)
    assert jnp.allclose(private32, ref_private, atol=1e-4, rtol=1e-4)

    # Default bf16 path (halved adj HBM stream, full-rate MXU), loose check.
    common, private = model(x, adj)
    common = jax.block_until_ready(common)
    private = jax.block_until_ready(private)
    assert common.shape == (n_nodes, c_dim)
    assert private.shape == (n_nodes, p_dim)
    assert jnp.allclose(common, ref_common, atol=3e-2, rtol=3e-2)
    assert jnp.allclose(private, ref_private, atol=3e-2, rtol=3e-2)

    print("KERNEL_OK")
</pallas_src>

<mosaic_0001>
module attributes {stable_mosaic.version = 11 : i64} {
  func.func @_gnn_encoder_kernel(%arg0: i32, %arg1: i32, %arg2: memref<256x256xf32, #tpu.memory_space<vmem>>, %arg3: memref<256x128xf32, #tpu.memory_space<vmem>>, %arg4: memref<1x128xf32, #tpu.memory_space<vmem>>, %arg5: memref<128x128xf32, #tpu.memory_space<vmem>>, %arg6: memref<1x128xf32, #tpu.memory_space<vmem>>, %arg7: memref<256x128xf32, #tpu.memory_space<vmem>>, %arg8: memref<256x128xf32, #tpu.memory_space<vmem>>) attributes {dimension_semantics = [#tpu.dimension_semantics<parallel>, #tpu.dimension_semantics<arbitrary>], iteration_bounds = array<i64: 1, 1>, scalar_prefetch = 0 : i64, scratch_operands = 1 : i64, tpu.core_type = #tpu.core_type<tc>, window_params = [{transform_indices = @transform_0, window_bounds = array<i64: 256, 256>}, {transform_indices = @transform_1, window_bounds = array<i64: 256, 128>}, {pipeline_mode = #tpu.pipeline_mode<synchronous>, transform_indices = @transform_2, window_bounds = array<i64: 1, 128>}, {pipeline_mode = #tpu.pipeline_mode<synchronous>, transform_indices = @transform_3, window_bounds = array<i64: 128, 128>}, {pipeline_mode = #tpu.pipeline_mode<synchronous>, transform_indices = @transform_4, window_bounds = array<i64: 1, 128>}, {transform_indices = @transform_5, window_bounds = array<i64: 256, 128>}]} {
    %c0_i32 = arith.constant 0 : i32
    %0 = arith.cmpi eq, %arg1, %c0_i32 : i32
    %1 = arith.extui %0 : i1 to i32
    %c0_i32_0 = arith.constant 0 : i32
    %2 = arith.cmpi ne, %1, %c0_i32_0 : i32
    scf.if %2 {
      %cst_10 = arith.constant 0.000000e+00 : f32
      %12 = vector.broadcast %cst_10 : f32 to vector<256x128xf32>
      %c0_11 = arith.constant 0 : index
      %c0_12 = arith.constant 0 : index
      %13 = vector.load %arg8[%c0_11, %c0_12] : memref<256x128xf32, #tpu.memory_space<vmem>>, vector<256x128xf32>
      tpu.vector_store %arg8[%c0_11, %c0_12], %12 {strides = array<i32>} : memref<256x128xf32, #tpu.memory_space<vmem>>, vector<256x128xf32>,
    } else {
    }
    %c0 = arith.constant 0 : index
    %c0_1 = arith.constant 0 : index
    %3 = vector.load %arg8[%c0, %c0_1] : memref<256x128xf32, #tpu.memory_space<vmem>>, vector<256x128xf32>
    %c0_2 = arith.constant 0 : index
    %c0_3 = arith.constant 0 : index
    %4 = vector.load %arg2[%c0_2, %c0_3] : memref<256x256xf32, #tpu.memory_space<vmem>>, vector<256x256xf32>
    %c0_4 = arith.constant 0 : index
    %c0_5 = arith.constant 0 : index
    %5 = vector.load %arg3[%c0_4, %c0_5] : memref<256x128xf32, #tpu.memory_space<vmem>>, vector<256x128xf32>
    %cst = arith.constant dense<0.000000e+00> : vector<256x128xf32>
    %6 = tpu.matmul %4, %5, %cst {dimension_numbers = #tpu.dot_dimension_numbers<[1], [0], [0], [1], [0, 0, 1, 1], [], []>} : vector<256x256xf32>, vector<256x128xf32>, vector<256x128xf32> -> vector<256x128xf32>
    %7 = arith.addf %3, %6 : vector<256x128xf32>
    %c0_6 = arith.constant 0 : index
    %c0_7 = arith.constant 0 : index
    %8 = vector.load %arg8[%c0_6, %c0_7] : memref<256x128xf32, #tpu.memory_space<vmem>>, vector<256x128xf32>
    tpu.vector_store %arg8[%c0_6, %c0_7], %7 {strides = array<i32>} : memref<256x128xf32, #tpu.memory_space<vmem>>, vector<256x128xf32>,
    %c0_i32_8 = arith.constant 0 : i32
    %9 = arith.cmpi eq, %arg1, %c0_i32_8 : i32
    %10 = arith.extui %9 : i1 to i32
    %c0_i32_9 = arith.constant 0 : i32
    %11 = arith.cmpi ne, %10, %c0_i32_9 : i32
    scf.if %11 {
      %c0_10 = arith.constant 0 : index
      %c0_11 = arith.constant 0 : index
      %12 = vector.load %arg8[%c0_10, %c0_11] : memref<256x128xf32, #tpu.memory_space<vmem>>, vector<256x128xf32>
      %c0_12 = arith.constant 0 : index
      %c0_13 = arith.constant 0 : index
      %13 = vector.load %arg4[%c0_12, %c0_13] : memref<1x128xf32, #tpu.memory_space<vmem>>, vector<1x128xf32>
      %14 = vector.broadcast %13 : vector<1x128xf32> to vector<256x128xf32>
      %15 = arith.addf %12, %14 : vector<256x128xf32>
      %cst_14 = arith.constant 0.000000e+00 : f32
      %16 = vector.broadcast %cst_14 : f32 to vector<256x128xf32>
      %17 = arith.maximumf %15, %16 : vector<256x128xf32>
      %c0_15 = arith.constant 0 : index
      %c0_16 = arith.constant 0 : index
      %18 = vector.load %arg5[%c0_15, %c0_16] : memref<128x128xf32, #tpu.memory_space<vmem>>, vector<128x128xf32>
      %cst_17 = arith.constant dense<0.000000e+00> : vector<256x128xf32>
      %19 = tpu.matmul %17, %18, %cst_17 {dimension_numbers = #tpu.dot_dimension_numbers<[1], [0], [0], [1], [0, 0, 1, 1], [], []>} : vector<256x128xf32>, vector<128x128xf32>, vector<256x128xf32> -> vector<256x128xf32>
      %c0_18 = arith.constant 0 : index
      %c0_19 = arith.constant 0 : index
      %20 = vector.load %arg6[%c0_18, %c0_19] : memref<1x128xf32, #tpu.memory_space<vmem>>, vector<1x128xf32>
      %21 = vector.broadcast %20 : vector<1x128xf32> to vector<256x128xf32>
      %22 = arith.addf %19, %21 : vector<256x128xf32>
      %c0_20 = arith.constant 0 : index
      %c0_21 = arith.constant 0 : index
      %23 = vector.load %arg7[%c0_20, %c0_21] : memref<256x128xf32, #tpu.memory_space<vmem>>, vector<256x128xf32>
      tpu.vector_store %arg7[%c0_20, %c0_21], %22 {strides = array<i32>} : memref<256x128xf32, #tpu.memory_space<vmem>>, vector<256x128xf32>,
    } else {
    }
    return
  }
  func.func @transform_0(%arg0: i32, %arg1: i32) -> (i32, i32) {
    %c0_i32 = arith.constant 0 : i32
    return %arg0, %arg1 : i32, i32
  }
  func.func @transform_1(%arg0: i32, %arg1: i32) -> (i32, i32) {
    %c0_i32 = arith.constant 0 : i32
    %c0_i32_0 = arith.constant 0 : i32
    return %arg1, %c0_i32 : i32, i32
  }
  func.func @transform_2(%arg0: i32, %arg1: i32) -> (i32, i32) {
    %c0_i32 = arith.constant 0 : i32
    %c0_i32_0 = arith.constant 0 : i32
    %c0_i32_1 = arith.constant 0 : i32
    return %c0_i32, %c0_i32_0 : i32, i32
  }
  func.func @transform_3(%arg0: i32, %arg1: i32) -> (i32, i32) {
    %c0_i32 = arith.constant 0 : i32
    %c0_i32_0 = arith.constant 0 : i32
    %c0_i32_1 = arith.constant 0 : i32
    return %c0_i32, %c0_i32_0 : i32, i32
  }
  func.func @transform_4(%arg0: i32, %arg1: i32) -> (i32, i32) {
    %c0_i32 = arith.constant 0 : i32
    %c0_i32_0 = arith.constant 0 : i32
    %c0_i32_1 = arith.constant 0 : i32
    return %c0_i32, %c0_i32_0 : i32, i32
  }
  func.func @transform_5(%arg0: i32, %arg1: i32) -> (i32, i32) {
    %c0_i32 = arith.constant 0 : i32
    %c0_i32_0 = arith.constant 0 : i32
    return %arg0, %c0_i32 : i32, i32
  }
}

</mosaic_0001>

<llo_original>
// kernel: tpu_custom_call.1
$region0: #{tpu_custom_call.1}
  #allocation0 [shape = 'u32[]', space=smem, size = 0x4, offset = 0x4, fixed_abs, tag = 'smem constant byte address 0x4 - core index']
  #allocation1 [shape = 'u32[144,128]{1,0:T(1,128)}', space=vmem, size = 0x12000, scoped, tag = 'internal scratch']
  #allocation2 [shape = 'f32[256,128]{1,0:T(8,128)}', space=vmem, size = 0x20000, scoped, tag = 'scratch operand']
  %s0 = inlined_call_operand.hbm [shape: f32[256,256], index: 0, kind: input, shape index: {}]
  %s1 = inlined_call_operand.hbm [shape: f32[256,128], index: 1, kind: input, shape index: {}]
  %s2 = inlined_call_operand.vmem [shape: f32[1,128], index: 2, kind: input, shape index: {}]
  %s3 = inlined_call_operand.hbm [shape: f32[128,128], index: 3, kind: input, shape index: {}]
  %s4 = inlined_call_operand.vmem [shape: f32[1,128], index: 4, kind: input, shape index: {}]
  %s5 = inlined_call_operand.hbm [shape: f32[256,128], index: 5, kind: output, shape index: {}]
  %s6 = sld [smem:[#allocation0]]
  $region50: #{tpu_custom_call.1} parent=0
    _
  %s8 = ssub.s32 1, %s6
  %s9 = scalar_select 0, %s8, %s6
  $region1: #{tpu_custom_call.1} parent=0
    #allocation3 [shape = 'u8[262144]{0}', space=vmem, size = 0x40000, scoped, tag = 'input window, operand 0, single buffered']
    #allocation4 [shape = 's32[1]{0}', space=sflag, size = 0x4, scoped, tag = 'scoped memory for tpu_custom_call.1']
    #allocation5 [shape = 's32[1]{0}', space=sflag, size = 0x4, scoped, tag = 'scoped memory for tpu_custom_call.1']
    #allocation6 [shape = 'u8[131072]{0}', space=vmem, size = 0x20000, scoped, tag = 'input window, operand 1, single buffered']
    #allocation7 [shape = 's32[1]{0}', space=sflag, size = 0x4, scoped, tag = 'scoped memory for tpu_custom_call.1']
    #allocation8 [shape = 'u8[65536]{0}', space=vmem, size = 0x10000, scoped, tag = 'input window, operand 3, single buffered']
    #allocation9 [shape = 'u8[131072]{0}', space=vmem, size = 0x20000, scoped, tag = 'output window, operand 0, single buffered']
    %10 = vsyncpa [#allocation4], 0
    %11 = vsyncpa [#allocation7], 0
    %12 = vsyncpa [#allocation5], 0
    // Predicated region
    $region2: #{tpu_custom_call.1} parent=1 // pred_check
      _
    $region3: #{tpu_custom_call.1} parent=1 // pred_check_branch
      %14 = sbr.rel (0) target = $region5
    $region4: #{tpu_custom_call.1} parent=1 // pred_region
      %s16 = ssub.s32 8192, 8192
      %17 = vsyncadd [#allocation4], %s16
      %s18 = sshll.u32 [#allocation3], 4
      %s19 = int_to_ptr.vmem [resolvable:$true] %s18
      %24 = dma.hbm_to_vmem [thread:$0]  %s0, 8192, %s19, [#allocation4], 256, 256, 16
    $region5: #{tpu_custom_call.1} parent=1 // pred_fallthru
      _
    // Predicated region
    $region6: #{tpu_custom_call.1} parent=1 // pred_check
      _
    $region7: #{tpu_custom_call.1} parent=1 // pred_check_branch
      %26 = sbr.rel (0) target = $region9
    $region8: #{tpu_custom_call.1} parent=1 // pred_region
      %s28 = ssub.s32 4096, 4096
      %29 = vsyncadd [#allocation7], %s28
      %s30 = sshll.u32 [#allocation6], 4
      %s31 = int_to_ptr.vmem [resolvable:$true] %s30
      %36 = dma.hbm_to_vmem [thread:$0]  %s1, 4096, %s31, [#allocation7], 128, 128, 8
    $region9: #{tpu_custom_call.1} parent=1 // pred_fallthru
      _
    // Predicated region
    $region10: #{tpu_custom_call.1} parent=1 // pred_check
      _
    $region11: #{tpu_custom_call.1} parent=1 // pred_check_branch
      %38 = sbr.rel (0) target = $region13
    $region12: #{tpu_custom_call.1} parent=1 // pred_region
      _
    $region13: #{tpu_custom_call.1} parent=1 // pred_fallthru
      _
    // Predicated region
    $region14: #{tpu_custom_call.1} parent=1 // pred_check
      _
    $region15: #{tpu_custom_call.1} parent=1 // pred_check_branch
      %40 = sbr.rel (0) target = $region17
    $region16: #{tpu_custom_call.1} parent=1 // pred_region
      %s42 = ssub.s32 2048, 2048
      %43 = vsyncadd [#allocation7], %s42
      %s44 = sshll.u32 [#allocation8], 4
      %s45 = int_to_ptr.vmem [resolvable:$true] %s44
      %50 = dma.hbm_to_vmem [thread:$0]  %s3, 2048, %s45, [#allocation7], 128, 128, 8
    $region17: #{tpu_custom_call.1} parent=1 // pred_fallthru
      _
    // Predicated region
    $region18: #{tpu_custom_call.1} parent=1 // pred_check
      _
    $region19: #{tpu_custom_call.1} parent=1 // pred_check_branch
      %52 = sbr.rel (0) target = $region21
    $region20: #{tpu_custom_call.1} parent=1 // pred_region
      _
    $region21: #{tpu_custom_call.1} parent=1 // pred_fallthru
      _
    // Predicated region
    $region22: #{tpu_custom_call.1} parent=1 // pred_check
      _
    $region23: #{tpu_custom_call.1} parent=1 // pred_check_branch
      %54 = sbr.rel (0) target = $region25
    $region24: #{tpu_custom_call.1} parent=1 // pred_region
      %55 = dma.done [#allocation4], 8192
    $region25: #{tpu_custom_call.1} parent=1 // pred_fallthru
      _
    // Predicated region
    $region26: #{tpu_custom_call.1} parent=1 // pred_check
      _
    $region27: #{tpu_custom_call.1} parent=1 // pred_check_branch
      %57 = sbr.rel (0) target = $region29
    $region28: #{tpu_custom_call.1} parent=1 // pred_region
      %58 = dma.done [#allocation7], 4096
    $region29: #{tpu_custom_call.1} parent=1 // pred_fallthru
      _
    // Predicated region
    $region30: #{tpu_custom_call.1} parent=1 // pred_check
      _
    $region31: #{tpu_custom_call.1} parent=1 // pred_check_branch
      %60 = sbr.rel (0) target = $region33
    $region32: #{tpu_custom_call.1} parent=1 // pred_region
      %61 = dma.done [#allocation7], 2048
    $region33: #{tpu_custom_call.1} parent=1 // pred_fallthru
      _
    %p62 = scmp.eq.s32.totalorder 0, 0
    // Predicated region
    $region34: #{tpu_custom_call.1} parent=1 // pred_check
      %p63 = pneg %p62
    $region35: #{tpu_custom_call.1} parent=1 // pred_check_branch
      %65 = sbr.rel (%p63) target = $region37
    $region36: #{tpu_custom_call.1} parent=1 // pred_region
      %66 = vst [vmem:[#allocation2] sm:$0xff] 0.0
      %67 = vst [vmem:[#allocation2 + $0x8] sm:$0xff] 0.0
      %68 = vst [vmem:[#allocation2 + $0x10] sm:$0xff] 0.0
      %69 = vst [vmem:[#allocation2 + $0x18] sm:$0xff] 0.0
      %70 = vst [vmem:[#allocation2 + $0x20] sm:$0xff] 0.0
      %71 = vst [vmem:[#allocation2 + $0x28] sm:$0xff] 0.0
      %72 = vst [vmem:[#allocation2 + $0x30] sm:$0xff] 0.0
      %73 = vst [vmem:[#allocation2 + $0x38] sm:$0xff] 0.0
      %74 = vst [vmem:[#allocation2 + $0x40] sm:$0xff] 0.0
      %75 = vst [vmem:[#allocation2 + $0x48] sm:$0xff] 0.0
      %76 = vst [vmem:[#allocation2 + $0x50] sm:$0xff] 0.0
      %77 = vst [vmem:[#allocation2 + $0x58] sm:$0xff] 0.0
      %78 = vst [vmem:[#allocation2 + $0x60] sm:$0xff] 0.0
      %79 = vst [vmem:[#allocation2 + $0x68] sm:$0xff] 0.0
      %80 = vst [vmem:[#allocation2 + $0x70] sm:$0xff] 0.0
      %81 = vst [vmem:[#allocation2 + $0x78] sm:$0xff] 0.0
      %82 = vst [vmem:[#allocation2 + $0x80] sm:$0xff] 0.0
      %83 = vst [vmem:[#allocation2 + $0x88] sm:$0xff] 0.0
      %84 = vst [vmem:[#allocation2 + $0x90] sm:$0xff] 0.0
      %85 = vst [vmem:[#allocation2 + $0x98] sm:$0xff] 0.0
      %86 = vst [vmem:[#allocation2 + $0xa0] sm:$0xff] 0.0
      %87 = vst [vmem:[#allocation2 + $0xa8] sm:$0xff] 0.0
      %88 = vst [vmem:[#allocation2 + $0xb0] sm:$0xff] 0.0
      %89 = vst [vmem:[#allocation2 + $0xb8] sm:$0xff] 0.0
      %90 = vst [vmem:[#allocation2 + $0xc0] sm:$0xff] 0.0
      %91 = vst [vmem:[#allocation2 + $0xc8] sm:$0xff] 0.0
      %92 = vst [vmem:[#allocation2 + $0xd0] sm:$0xff] 0.0
      %93 = vst [vmem:[#allocation2 + $0xd8] sm:$0xff] 0.0
      %94 = vst [vmem:[#allocation2 + $0xe0] sm:$0xff] 0.0
      %95 = vst [vmem:[#allocation2 + $0xe8] sm:$0xff] 0.0
      %96 = vst [vmem:[#allocation2 + $0xf0] sm:$0xff] 0.0
      %97 = vst [vmem:[#allocation2 + $0xf8] sm:$0xff] 0.0
    $region37: #{tpu_custom_call.1} parent=1 // pred_fallthru
      _
    %v98 = vld [vmem:[#allocation2] sm:$0xff]
    %v99 = vld [vmem:[#allocation2 + $0x8] sm:$0xff]
    %v100 = vld [vmem:[#allocation2 + $0x10] sm:$0xff]
    %v101 = vld [vmem:[#allocation2 + $0x18] sm:$0xff]
    %v102 = vld [vmem:[#allocation2 + $0x20] sm:$0xff]
    %v103 = vld [vmem:[#allocation2 + $0x28] sm:$0xff]
    %v104 = vld [vmem:[#allocation2 + $0x30] sm:$0xff]
    %v105 = vld [vmem:[#allocation2 + $0x38] sm:$0xff]
    %v106 = vld [vmem:[#allocation2 + $0x40] sm:$0xff]
    %v107 = vld [vmem:[#allocation2 + $0x48] sm:$0xff]
    %v108 = vld [vmem:[#allocation2 + $0x50] sm:$0xff]
    %v109 = vld [vmem:[#allocation2 + $0x58] sm:$0xff]
    %v110 = vld [vmem:[#allocation2 + $0x60] sm:$0xff]
    %v111 = vld [vmem:[#allocation2 + $0x68] sm:$0xff]
    %v112 = vld [vmem:[#allocation2 + $0x70] sm:$0xff]
    %v113 = vld [vmem:[#allocation2 + $0x78] sm:$0xff]
    %v114 = vld [vmem:[#allocation2 + $0x80] sm:$0xff]
    %v115 = vld [vmem:[#allocation2 + $0x88] sm:$0xff]
    %v116 = vld [vmem:[#allocation2 + $0x90] sm:$0xff]
    %v117 = vld [vmem:[#allocation2 + $0x98] sm:$0xff]
    %v118 = vld [vmem:[#allocation2 + $0xa0] sm:$0xff]
    %v119 = vld [vmem:[#allocation2 + $0xa8] sm:$0xff]
    %v120 = vld [vmem:[#allocation2 + $0xb0] sm:$0xff]
    %v121 = vld [vmem:[#allocation2 + $0xb8] sm:$0xff]
    %v122 = vld [vmem:[#allocation2 + $0xc0] sm:$0xff]
    %v123 = vld [vmem:[#allocation2 + $0xc8] sm:$0xff]
    %v124 = vld [vmem:[#allocation2 + $0xd0] sm:$0xff]
    %v125 = vld [vmem:[#allocation2 + $0xd8] sm:$0xff]
    %v126 = vld [vmem:[#allocation2 + $0xe0] sm:$0xff]
    %v127 = vld [vmem:[#allocation2 + $0xe8] sm:$0xff]
    %v128 = vld [vmem:[#allocation2 + $0xf0] sm:$0xff]
    %v129 = vld [vmem:[#allocation2 + $0xf8] sm:$0xff]
    %v130 = vld [vmem:[#allocation3] sm:$0xff]
    %v131 = vld [vmem:[#allocation3 + $0x8] sm:$0xff]
    %v132 = vld [vmem:[#allocation3 + $0x10] sm:$0xff]
    %v133 = vld [vmem:[#allocation3 + $0x18] sm:$0xff]
    %v134 = vld [vmem:[#allocation3 + $0x20] sm:$0xff]
    %v135 = vld [vmem:[#allocation3 + $0x28] sm:$0xff]
    %v136 = vld [vmem:[#allocation3 + $0x30] sm:$0xff]
    %v137 = vld [vmem:[#allocation3 + $0x38] sm:$0xff]
    %v138 = vld [vmem:[#allocation3 + $0x40] sm:$0xff]
    %v139 = vld [vmem:[#allocation3 + $0x48] sm:$0xff]
    %v140 = vld [vmem:[#allocation3 + $0x50] sm:$0xff]
    %v141 = vld [vmem:[#allocation3 + $0x58] sm:$0xff]
    %v142 = vld [vmem:[#allocation3 + $0x60] sm:$0xff]
    %v143 = vld [vmem:[#allocation3 + $0x68] sm:$0xff]
    %v144 = vld [vmem:[#allocation3 + $0x70] sm:$0xff]
    %v145 = vld [vmem:[#allocation3 + $0x78] sm:$0xff]
    %v146 = vld [vmem:[#allocation3 + $0x80] sm:$0xff]
    %v147 = vld [vmem:[#allocation3 + $0x88] sm:$0xff]
    %v148 = vld [vmem:[#allocation3 + $0x90] sm:$0xff]
    %v149 = vld [vmem:[#allocation3 + $0x98] sm:$0xff]
    %v150 = vld [vmem:[#allocation3 + $0xa0] sm:$0xff]
    %v151 = vld [vmem:[#allocation3 + $0xa8] sm:$0xff]
    %v152 = vld [vmem:[#allocation3 + $0xb0] sm:$0xff]
    %v153 = vld [vmem:[#allocation3 + $0xb8] sm:$0xff]
    %v154 = vld [vmem:[#allocation3 + $0xc0] sm:$0xff]
    %v155 = vld [vmem:[#allocation3 + $0xc8] sm:$0xff]
    %v156 = vld [vmem:[#allocation3 + $0xd0] sm:$0xff]
    %v157 = vld [vmem:[#allocation3 + $0xd8] sm:$0xff]
    %v158 = vld [vmem:[#allocation3 + $0xe0] sm:$0xff]
    %v159 = vld [vmem:[#allocation3 + $0xe8] sm:$0xff]
    %v160 = vld [vmem:[#allocation3 + $0xf0] sm:$0xff]
    %v161 = vld [vmem:[#allocation3 + $0xf8] sm:$0xff]
    %v162 = vld [vmem:[#allocation3 + $0x100] sm:$0xff]
    %v163 = vld [vmem:[#allocation3 + $0x108] sm:$0xff]
    %v164 = vld [vmem:[#allocation3 + $0x110] sm:$0xff]
    %v165 = vld [vmem:[#allocation3 + $0x118] sm:$0xff]
    %v166 = vld [vmem:[#allocation3 + $0x120] sm:$0xff]
    %v167 = vld [vmem:[#allocation3 + $0x128] sm:$0xff]
    %v168 = vld [vmem:[#allocation3 + $0x130] sm:$0xff]
    %v169 = vld [vmem:[#allocation3 + $0x138] sm:$0xff]
    %v170 = vld [vmem:[#allocation3 + $0x140] sm:$0xff]
    %v171 = vld [vmem:[#allocation3 + $0x148] sm:$0xff]
    %v172 = vld [vmem:[#allocation3 + $0x150] sm:$0xff]
    %v173 = vld [vmem:[#allocation3 + $0x158] sm:$0xff]
    %v174 = vld [vmem:[#allocation3 + $0x160] sm:$0xff]
    %v175 = vld [vmem:[#allocation3 + $0x168] sm:$0xff]
    %v176 = vld [vmem:[#allocation3 + $0x170] sm:$0xff]
    %v177 = vld [vmem:[#allocation3 + $0x178] sm:$0xff]
    %v178 = vld [vmem:[#allocation3 + $0x180] sm:$0xff]
    %v179 = vld [vmem:[#allocation3 + $0x188] sm:$0xff]
    %v180 = vld [vmem:[#allocation3 + $0x190] sm:$0xff]
    %v181 = vld [vmem:[#allocation3 + $0x198] sm:$0xff]
    %v182 = vld [vmem:[#allocation3 + $0x1a0] sm:$0xff]
    %v183 = vld [vmem:[#allocation3 + $0x1a8] sm:$0xff]
    %v184 = vld [vmem:[#allocation3 + $0x1b0] sm:$0xff]
    %v185 = vld [vmem:[#allocation3 + $0x1b8] sm:$0xff]
    %v186 = vld [vmem:[#allocation3 + $0x1c0] sm:$0xff]
    %v187 = vld [vmem:[#allocation3 + $0x1c8] sm:$0xff]
    %v188 = vld [vmem:[#allocation3 + $0x1d0] sm:$0xff]
    %v189 = vld [vmem:[#allocation3 + $0x1d8] sm:$0xff]
    %v190 = vld [vmem:[#allocation3 + $0x1e0] sm:$0xff]
    %v191 = vld [vmem:[#allocation3 + $0x1e8] sm:$0xff]
    %v192 = vld [vmem:[#allocation3 + $0x1f0] sm:$0xff]
    %v193 = vld [vmem:[#allocation3 + $0x1f8] sm:$0xff]
    %v194 = vld [vmem:[#allocation6] sm:$0xff]
    %v195 = vld [vmem:[#allocation6 + $0x8] sm:$0xff]
    %v196 = vld [vmem:[#allocation6 + $0x10] sm:$0xff]
    %v197 = vld [vmem:[#allocation6 + $0x18] sm:$0xff]
    %v198 = vld [vmem:[#allocation6 + $0x20] sm:$0xff]
    %v199 = vld [vmem:[#allocation6 + $0x28] sm:$0xff]
    %v200 = vld [vmem:[#allocation6 + $0x30] sm:$0xff]
    %v201 = vld [vmem:[#allocation6 + $0x38] sm:$0xff]
    %v202 = vld [vmem:[#allocation6 + $0x40] sm:$0xff]
    %v203 = vld [vmem:[#allocation6 + $0x48] sm:$0xff]
    %v204 = vld [vmem:[#allocation6 + $0x50] sm:$0xff]
    %v205 = vld [vmem:[#allocation6 + $0x58] sm:$0xff]
    %v206 = vld [vmem:[#allocation6 + $0x60] sm:$0xff]
    %v207 = vld [vmem:[#allocation6 + $0x68] sm:$0xff]
    %v208 = vld [vmem:[#allocation6 + $0x70] sm:$0xff]
    %v209 = vld [vmem:[#allocation6 + $0x78] sm:$0xff]
    %v210 = vld [vmem:[#allocation6 + $0x80] sm:$0xff]
    %v211 = vld [vmem:[#allocation6 + $0x88] sm:$0xff]
    %v212 = vld [vmem:[#allocation6 + $0x90] sm:$0xff]
    %v213 = vld [vmem:[#allocation6 + $0x98] sm:$0xff]
    %v214 = vld [vmem:[#allocation6 + $0xa0] sm:$0xff]
    %v215 = vld [vmem:[#allocation6 + $0xa8] sm:$0xff]
    %v216 = vld [vmem:[#allocation6 + $0xb0] sm:$0xff]
    %v217 = vld [vmem:[#allocation6 + $0xb8] sm:$0xff]
    %v218 = vld [vmem:[#allocation6 + $0xc0] sm:$0xff]
    %v219 = vld [vmem:[#allocation6 + $0xc8] sm:$0xff]
    %v220 = vld [vmem:[#allocation6 + $0xd0] sm:$0xff]
    %v221 = vld [vmem:[#allocation6 + $0xd8] sm:$0xff]
    %v222 = vld [vmem:[#allocation6 + $0xe0] sm:$0xff]
    %v223 = vld [vmem:[#allocation6 + $0xe8] sm:$0xff]
    %v224 = vld [vmem:[#allocation6 + $0xf0] sm:$0xff]
    %v225 = vld [vmem:[#allocation6 + $0xf8] sm:$0xff]
    %226 = vmatprep.subr.mxu0 0.0
    %227 = vmatpush1.msra.mxu0 %v194
    %228 = vmatprep.subr.mxu0 0.0
    %229 = vmatpush1.msra.mxu0 %v195
    %230 = vmatprep.subr.mxu0 0.0
    %231 = vmatpush1.msra.mxu0 %v196
    %232 = vmatprep.subr.mxu0 0.0
    %233 = vmatpush1.msra.mxu0 %v197
    %234 = vmatprep.subr.mxu0 0.0
    %235 = vmatpush1.msra.mxu0 %v198
    %236 = vmatprep.subr.mxu0 0.0
    %237 = vmatpush1.msra.mxu0 %v199
    %238 = vmatprep.subr.mxu0 0.0
    %239 = vmatpush1.msra.mxu0 %v200
    %240 = vmatprep.subr.mxu0 0.0
    %241 = vmatpush1.msra.mxu0 %v201
    %242 = vmatprep.subr.mxu0 0.0
    %243 = vmatpush1.msra.mxu0 %v202
    %244 = vmatprep.subr.mxu0 0.0
    %245 = vmatpush1.msra.mxu0 %v203
    %246 = vmatprep.subr.mxu0 0.0
    %247 = vmatpush1.msra.mxu0 %v204
    %248 = vmatprep.subr.mxu0 0.0
    %249 = vmatpush1.msra.mxu0 %v205
    %250 = vmatprep.subr.mxu0 0.0
    %251 = vmatpush1.msra.mxu0 %v206
    %252 = vmatprep.subr.mxu0 0.0
    %253 = vmatpush1.msra.mxu0 %v207
    %254 = vmatprep.subr.mxu0 0.0
    %255 = vmatpush1.msra.mxu0 %v208
    %256 = vmatprep.subr.mxu0 0.0
    %257 = vmatpush1.msra.mxu0 %v209
    %258 = vmatprep.subr.mxu0 0.0
    %259 = vmatpush1.msra.mxu0 %v210
    %260 = vmatprep.subr.mxu0 0.0
    %261 = vmatpush1.msra.mxu0 %v211
    %262 = vmatprep.subr.mxu0 0.0
    %263 = vmatpush1.msra.mxu0 %v212
    %264 = vmatprep.subr.mxu0 0.0
    %265 = vmatpush1.msra.mxu0 %v213
    %266 = vmatprep.subr.mxu0 0.0
    %267 = vmatpush1.msra.mxu0 %v214
    %268 = vmatprep.subr.mxu0 0.0
    %269 = vmatpush1.msra.mxu0 %v215
    %270 = vmatprep.subr.mxu0 0.0
    %271 = vmatpush1.msra.mxu0 %v216
    %272 = vmatprep.subr.mxu0 0.0
    %273 = vmatpush1.msra.mxu0 %v217
    %274 = vmatprep.subr.mxu0 0.0
    %275 = vmatpush1.msra.mxu0 %v218
    %276 = vmatprep.subr.mxu0 0.0
    %277 = vmatpush1.msra.mxu0 %v219
    %278 = vmatprep.subr.mxu0 0.0
    %279 = vmatpush1.msra.mxu0 %v220
    %280 = vmatprep.subr.mxu0 0.0
    %281 = vmatpush1.msra.mxu0 %v221
    %282 = vmatprep.subr.mxu0 0.0
    %283 = vmatpush1.msra.mxu0 %v222
    %284 = vmatprep.subr.mxu0 0.0
    %285 = vmatpush1.msra.mxu0 %v223
    %286 = vmatprep.subr.mxu0 0.0
    %287 = vmatpush1.msra.mxu0 %v224
    %288 = vmatprep.subr.mxu0 0.0
    %289 = vmatpush1.msra.mxu0 %v225
    %290 = vmatprep.mubr.f32.mxu0 %v131
    %291 = vmatmul.mubr.f32.gmra.mrb[0].mxu0 %v130
    %v292 = vpop.f32.mrb[0].mxu0
    %v293 = vadd.f32 0.0, %v292
    %v294 = vpop.f32.mrb[0].mxu0
    %295 = vmatprep.mubr.f32.mxu0 %v133
    %296 = vmatmul.mubr.f32.gmra.mrb[0].mxu0 %v132
    %v297 = vpop.f32.mrb[0].mxu0
    %v298 = vadd.f32 0.0, %v297
    %v299 = vpop.f32.mrb[0].mxu0
    %300 = vmatprep.mubr.f32.mxu0 %v135
    %301 = vmatmul.mubr.f32.gmra.mrb[0].mxu0 %v134
    %v302 = vpop.f32.mrb[0].mxu0
    %v303 = vadd.f32 0.0, %v302
    %v304 = vpop.f32.mrb[0].mxu0
    %305 = vmatprep.mubr.f32.mxu0 %v137
    %306 = vmatmul.mubr.f32.gmra.mrb[0].mxu0 %v136
    %v307 = vpop.f32.mrb[0].mxu0
    %v308 = vadd.f32 0.0, %v307
    %v309 = vpop.f32.mrb[0].mxu0
    %310 = vmatprep.mubr.f32.mxu0 %v139
    %311 = vmatmul.mubr.f32.gmra.mrb[0].mxu0 %v138
    %v312 = vpop.f32.mrb[0].mxu0
    %v313 = vadd.f32 0.0, %v312
    %v314 = vpop.f32.mrb[0].mxu0
    %315 = vmatprep.mubr.f32.mxu0 %v141
    %316 = vmatmul.mubr.f32.gmra.mrb[0].mxu0 %v140
    %v317 = vpop.f32.mrb[0].mxu0
    %v318 = vadd.f32 0.0, %v317
    %v319 = vpop.f32.mrb[0].mxu0
    %320 = vmatprep.mubr.f32.mxu0 %v143
    %321 = vmatmul.mubr.f32.gmra.mrb[0].mxu0 %v142
    %v322 = vpop.f32.mrb[0].mxu0
    %v323 = vadd.f32 0.0, %v322
    %v324 = vpop.f32.mrb[0].mxu0
    %325 = vmatprep.mubr.f32.mxu0 %v145
    %326 = vmatmul.mubr.f32.gmra.mrb[0].mxu0 %v144
    %v327 = vpop.f32.mrb[0].mxu0
    %v328 = vadd.f32 0.0, %v327
    %v329 = vpop.f32.mrb[0].mxu0
    %330 = vmatprep.mubr.f32.mxu0 %v147
    %331 = vmatmul.mubr.f32.gmra.mrb[0].mxu0 %v146
    %v332 = vpop.f32.mrb[0].mxu0
    %v333 = vadd.f32 0.0, %v332
    %v334 = vpop.f32.mrb[0].mxu0
    %335 = vmatprep.mubr.f32.mxu0 %v149
    %336 = vmatmul.mubr.f32.gmra.mrb[0].mxu0 %v148
    %v337 = vpop.f32.mrb[0].mxu0
    %v338 = vadd.f32 0.0, %v337
    %v339 = vpop.f32.mrb[0].mxu0
    %340 = vmatprep.mubr.f32.mxu0 %v151
    %341 = vmatmul.mubr.f32.gmra.mrb[0].mxu0 %v150
    %v342 = vpop.f32.mrb[0].mxu0
    %v343 = vadd.f32 0.0, %v342
    %v344 = vpop.f32.mrb[0].mxu0
    %345 = vmatprep.mubr.f32.mxu0 %v153
    %346 = vmatmul.mubr.f32.gmra.mrb[0].mxu0 %v152
    %v347 = vpop.f32.mrb[0].mxu0
    %v348 = vadd.f32 0.0, %v347
    %v349 = vpop.f32.mrb[0].mxu0
    %350 = vmatprep.mubr.f32.mxu0 %v155
    %351 = vmatmul.mubr.f32.gmra.mrb[0].mxu0 %v154
    %v352 = vpop.f32.mrb[0].mxu0
    %v353 = vadd.f32 0.0, %v352
    %v354 = vpop.f32.mrb[0].mxu0
    %355 = vmatprep.mubr.f32.mxu0 %v157
    %356 = vmatmul.mubr.f32.gmra.mrb[0].mxu0 %v156
    %v357 = vpop.f32.mrb[0].mxu0
    %v358 = vadd.f32 0.0, %v357
    %v359 = vpop.f32.mrb[0].mxu0
    %360 = vmatprep.mubr.f32.mxu0 %v159
    %361 = vmatmul.mubr.f32.gmra.mrb[0].mxu0 %v158
    %v362 = vpop.f32.mrb[0].mxu0
    %v363 = vadd.f32 0.0, %v362
    %v364 = vpop.f32.mrb[0].mxu0
    %365 = vmatprep.mubr.f32.mxu0 %v161
    %366 = vmatmul.mubr.f32.gmra.mrb[0].mxu0 %v160
    %v367 = vpop.f32.mrb[0].mxu0
    %v368 = vadd.f32 0.0, %v367
    %v369 = vpop.f32.mrb[0].mxu0
    %370 = vmatprep.mubr.f32.mxu0 %v163
    %371 = vmatmul.mubr.f32.gmra.mrb[0].mxu0 %v162
    %v372 = vpop.f32.mrb[0].mxu0
    %v373 = vadd.f32 0.0, %v372
    %v374 = vpop.f32.mrb[0].mxu0
    %375 = vmatprep.mubr.f32.mxu0 %v165
    %376 = vmatmul.mubr.f32.gmra.mrb[0].mxu0 %v164
    %v377 = vpop.f32.mrb[0].mxu0
    %v378 = vadd.f32 0.0, %v377
    %v379 = vpop.f32.mrb[0].mxu0
    %380 = vmatprep.mubr.f32.mxu0 %v167
    %381 = vmatmul.mubr.f32.gmra.mrb[0].mxu0 %v166
    %v382 = vpop.f32.mrb[0].mxu0
    %v383 = vadd.f32 0.0, %v382
    %v384 = vpop.f32.mrb[0].mxu0
    %385 = vmatprep.mubr.f32.mxu0 %v169
    %386 = vmatmul.mubr.f32.gmra.mrb[0].mxu0 %v168
    %v387 = vpop.f32.mrb[0].mxu0
    %v388 = vadd.f32 0.0, %v387
    %v389 = vpop.f32.mrb[0].mxu0
    %390 = vmatprep.mubr.f32.mxu0 %v171
    %391 = vmatmul.mubr.f32.gmra.mrb[0].mxu0 %v170
    %v392 = vpop.f32.mrb[0].mxu0
    %v393 = vadd.f32 0.0, %v392
    %v394 = vpop.f32.mrb[0].mxu0
    %395 = vmatprep.mubr.f32.mxu0 %v173
    %396 = vmatmul.mubr.f32.gmra.mrb[0].mxu0 %v172
    %v397 = vpop.f32.mrb[0].mxu0
    %v398 = vadd.f32 0.0, %v397
    %v399 = vpop.f32.mrb[0].mxu0
    %400 = vmatprep.mubr.f32.mxu0 %v175
    %401 = vmatmul.mubr.f32.gmra.mrb[0].mxu0 %v174
    %v402 = vpop.f32.mrb[0].mxu0
    %v403 = vadd.f32 0.0, %v402
    %v404 = vpop.f32.mrb[0].mxu0
    %405 = vmatprep.mubr.f32.mxu0 %v177
    %406 = vmatmul.mubr.f32.gmra.mrb[0].mxu0 %v176
    %v407 = vpop.f32.mrb[0].mxu0
    %v408 = vadd.f32 0.0, %v407
    %v409 = vpop.f32.mrb[0].mxu0
    %410 = vmatprep.mubr.f32.mxu0 %v179
    %411 = vmatmul.mubr.f32.gmra.mrb[0].mxu0 %v178
    %v412 = vpop.f32.mrb[0].mxu0
    %v413 = vadd.f32 0.0, %v412
    %v414 = vpop.f32.mrb[0].mxu0
    %415 = vmatprep.mubr.f32.mxu0 %v181
    %416 = vmatmul.mubr.f32.gmra.mrb[0].mxu0 %v180
    %v417 = vpop.f32.mrb[0].mxu0
    %v418 = vadd.f32 0.0, %v417
    %v419 = vpop.f32.mrb[0].mxu0
    %420 = vmatprep.mubr.f32.mxu0 %v183
    %421 = vmatmul.mubr.f32.gmra.mrb[0].mxu0 %v182
    %v422 = vpop.f32.mrb[0].mxu0
    %v423 = vadd.f32 0.0, %v422
    %v424 = vpop.f32.mrb[0].mxu0
    %425 = vmatprep.mubr.f32.mxu0 %v185
    %426 = vmatmul.mubr.f32.gmra.mrb[0].mxu0 %v184
    %v427 = vpop.f32.mrb[0].mxu0
    %v428 = vadd.f32 0.0, %v427
    %v429 = vpop.f32.mrb[0].mxu0
    %430 = vmatprep.mubr.f32.mxu0 %v187
    %431 = vmatmul.mubr.f32.gmra.mrb[0].mxu0 %v186
    %v432 = vpop.f32.mrb[0].mxu0
    %v433 = vadd.f32 0.0, %v432
    %v434 = vpop.f32.mrb[0].mxu0
    %435 = vmatprep.mubr.f32.mxu0 %v189
    %436 = vmatmul.mubr.f32.gmra.mrb[0].mxu0 %v188
    %v437 = vpop.f32.mrb[0].mxu0
    %v438 = vadd.f32 0.0, %v437
    %v439 = vpop.f32.mrb[0].mxu0
    %440 = vmatprep.mubr.f32.mxu0 %v191
    %441 = vmatmul.mubr.f32.gmra.mrb[0].mxu0 %v190
    %v442 = vpop.f32.mrb[0].mxu0
    %v443 = vadd.f32 0.0, %v442
    %v444 = vpop.f32.mrb[0].mxu0
    %445 = vmatprep.mubr.f32.mxu0 %v193
    %446 = vmatmul.mubr.f32.gmra.mrb[0].mxu0 %v192
    %v447 = vpop.f32.mrb[0].mxu0
    %v448 = vadd.f32 0.0, %v447
    %v449 = vpop.f32.mrb[0].mxu0
    %450 = vdwg.mxu0
    %v451 = vadd.f32 %v98, %v293
    %v452 = vadd.f32 %v99, %v298
    %v453 = vadd.f32 %v100, %v303
    %v454 = vadd.f32 %v101, %v308
    %v455 = vadd.f32 %v102, %v313
    %v456 = vadd.f32 %v103, %v318
    %v457 = vadd.f32 %v104, %v323
    %v458 = vadd.f32 %v105, %v328
    %v459 = vadd.f32 %v106, %v333
    %v460 = vadd.f32 %v107, %v338
    %v461 = vadd.f32 %v108, %v343
    %v462 = vadd.f32 %v109, %v348
    %v463 = vadd.f32 %v110, %v353
    %v464 = vadd.f32 %v111, %v358
    %v465 = vadd.f32 %v112, %v363
    %v466 = vadd.f32 %v113, %v368
    %v467 = vadd.f32 %v114, %v373
    %v468 = vadd.f32 %v115, %v378
    %v469 = vadd.f32 %v116, %v383
    %v470 = vadd.f32 %v117, %v388
    %v471 = vadd.f32 %v118, %v393
    %v472 = vadd.f32 %v119, %v398
    %v473 = vadd.f32 %v120, %v403
    %v474 = vadd.f32 %v121, %v408
    %v475 = vadd.f32 %v122, %v413
    %v476 = vadd.f32 %v123, %v418
    %v477 = vadd.f32 %v124, %v423
    %v478 = vadd.f32 %v125, %v428
    %v479 = vadd.f32 %v126, %v433
    %v480 = vadd.f32 %v127, %v438
    %v481 = vadd.f32 %v128, %v443
    %v482 = vadd.f32 %v129, %v448
    %483 = vst [vmem:[#allocation2] sm:$0xff] %v451
    %484 = vst [vmem:[#allocation2 + $0x8] sm:$0xff] %v452
    %485 = vst [vmem:[#allocation2 + $0x10] sm:$0xff] %v453
    %486 = vst [vmem:[#allocation2 + $0x18] sm:$0xff] %v454
    %487 = vst [vmem:[#allocation2 + $0x20] sm:$0xff] %v455
    %488 = vst [vmem:[#allocation2 + $0x28] sm:$0xff] %v456
    %489 = vst [vmem:[#allocation2 + $0x30] sm:$0xff] %v457
    %490 = vst [vmem:[#allocation2 + $0x38] sm:$0xff] %v458
    %491 = vst [vmem:[#allocation2 + $0x40] sm:$0xff] %v459
    %492 = vst [vmem:[#allocation2 + $0x48] sm:$0xff] %v460
    %493 = vst [vmem:[#allocation2 + $0x50] sm:$0xff] %v461
    %494 = vst [vmem:[#allocation2 + $0x58] sm:$0xff] %v462
    %495 = vst [vmem:[#allocation2 + $0x60] sm:$0xff] %v463
    %496 = vst [vmem:[#allocation2 + $0x68] sm:$0xff] %v464
    %497 = vst [vmem:[#allocation2 + $0x70] sm:$0xff] %v465
    %498 = vst [vmem:[#allocation2 + $0x78] sm:$0xff] %v466
    %499 = vst [vmem:[#allocation2 + $0x80] sm:$0xff] %v467
    %500 = vst [vmem:[#allocation2 + $0x88] sm:$0xff] %v468
    %501 = vst [vmem:[#allocation2 + $0x90] sm:$0xff] %v469
    %502 = vst [vmem:[#allocation2 + $0x98] sm:$0xff] %v470
    %503 = vst [vmem:[#allocation2 + $0xa0] sm:$0xff] %v471
    %504 = vst [vmem:[#allocation2 + $0xa8] sm:$0xff] %v472
    %505 = vst [vmem:[#allocation2 + $0xb0] sm:$0xff] %v473
    %506 = vst [vmem:[#allocation2 + $0xb8] sm:$0xff] %v474
    %507 = vst [vmem:[#allocation2 + $0xc0] sm:$0xff] %v475
    %508 = vst [vmem:[#allocation2 + $0xc8] sm:$0xff] %v476
    %509 = vst [vmem:[#allocation2 + $0xd0] sm:$0xff] %v477
    %510 = vst [vmem:[#allocation2 + $0xd8] sm:$0xff] %v478
    %511 = vst [vmem:[#allocation2 + $0xe0] sm:$0xff] %v479
    %512 = vst [vmem:[#allocation2 + $0xe8] sm:$0xff] %v480
    %513 = vst [vmem:[#allocation2 + $0xf0] sm:$0xff] %v481
    %514 = vst [vmem:[#allocation2 + $0xf8] sm:$0xff] %v482
    // Predicated region
    $region38: #{tpu_custom_call.1} parent=1 // pred_check
      %p515 = pneg %p62
    $region39: #{tpu_custom_call.1} parent=1 // pred_check_branch
      %517 = sbr.rel (%p515) target = $region41
    $region40: #{tpu_custom_call.1} parent=1 // pred_region
      %v518 = vld [vmem:[#allocation2] sm:$0xff]
      %v519 = vld [vmem:[#allocation2 + $0x8] sm:$0xff]
      %v520 = vld [vmem:[#allocation2 + $0x10] sm:$0xff]
      %v521 = vld [vmem:[#allocation2 + $0x18] sm:$0xff]
      %v522 = vld [vmem:[#allocation2 + $0x20] sm:$0xff]
      %v523 = vld [vmem:[#allocation2 + $0x28] sm:$0xff]
      %v524 = vld [vmem:[#allocation2 + $0x30] sm:$0xff]
      %v525 = vld [vmem:[#allocation2 + $0x38] sm:$0xff]
      %v526 = vld [vmem:[#allocation2 + $0x40] sm:$0xff]
      %v527 = vld [vmem:[#allocation2 + $0x48] sm:$0xff]
      %v528 = vld [vmem:[#allocation2 + $0x50] sm:$0xff]
      %v529 = vld [vmem:[#allocation2 + $0x58] sm:$0xff]
      %v530 = vld [vmem:[#allocation2 + $0x60] sm:$0xff]
      %v531 = vld [vmem:[#allocation2 + $0x68] sm:$0xff]
      %v532 = vld [vmem:[#allocation2 + $0x70] sm:$0xff]
      %v533 = vld [vmem:[#allocation2 + $0x78] sm:$0xff]
      %v534 = vld [vmem:[#allocation2 + $0x80] sm:$0xff]
      %v535 = vld [vmem:[#allocation2 + $0x88] sm:$0xff]
      %v536 = vld [vmem:[#allocation2 + $0x90] sm:$0xff]
      %v537 = vld [vmem:[#allocation2 + $0x98] sm:$0xff]
      %v538 = vld [vmem:[#allocation2 + $0xa0] sm:$0xff]
      %v539 = vld [vmem:[#allocation2 + $0xa8] sm:$0xff]
      %v540 = vld [vmem:[#allocation2 + $0xb0] sm:$0xff]
      %v541 = vld [vmem:[#allocation2 + $0xb8] sm:$0xff]
      %v542 = vld [vmem:[#allocation2 + $0xc0] sm:$0xff]
      %v543 = vld [vmem:[#allocation2 + $0xc8] sm:$0xff]
      %v544 = vld [vmem:[#allocation2 + $0xd0] sm:$0xff]
      %v545 = vld [vmem:[#allocation2 + $0xd8] sm:$0xff]
      %v546 = vld [vmem:[#allocation2 + $0xe0] sm:$0xff]
      %v547 = vld [vmem:[#allocation2 + $0xe8] sm:$0xff]
      %v548 = vld [vmem:[#allocation2 + $0xf0] sm:$0xff]
      %v549 = vld [vmem:[#allocation2 + $0xf8] sm:$0xff]
      %v550 = vld [vmem:[%s2] sm:$0x1]
      %v552 = vlaneseq
      %v553 = vshrl.u32 %v552, 7
      %v554 = vsub.s32 0, %v553
      %v555 = vrot.slane %v550, %v554
      %v557 = vadd.f32 %v518, %v555
      %v558 = vadd.f32 %v519, %v555
      %v559 = vadd.f32 %v520, %v555
      %v560 = vadd.f32 %v521, %v555
      %v561 = vadd.f32 %v522, %v555
      %v562 = vadd.f32 %v523, %v555
      %v563 = vadd.f32 %v524, %v555
      %v564 = vadd.f32 %v525, %v555
      %v565 = vadd.f32 %v526, %v555
      %v566 = vadd.f32 %v527, %v555
      %v567 = vadd.f32 %v528, %v555
      %v568 = vadd.f32 %v529, %v555
      %v569 = vadd.f32 %v530, %v555
      %v570 = vadd.f32 %v531, %v555
      %v571 = vadd.f32 %v532, %v555
      %v572 = vadd.f32 %v533, %v555
      %v573 = vadd.f32 %v534, %v555
      %v574 = vadd.f32 %v535, %v555
      %v575 = vadd.f32 %v536, %v555
      %v576 = vadd.f32 %v537, %v555
      %v577 = vadd.f32 %v538, %v555
      %v578 = vadd.f32 %v539, %v555
      %v579 = vadd.f32 %v540, %v555
      %v580 = vadd.f32 %v541, %v555
      %v581 = vadd.f32 %v542, %v555
      %v582 = vadd.f32 %v543, %v555
      %v583 = vadd.f32 %v544, %v555
      %v584 = vadd.f32 %v545, %v555
      %v585 = vadd.f32 %v546, %v555
      %v586 = vadd.f32 %v547, %v555
      %v587 = vadd.f32 %v548, %v555
      %v588 = vadd.f32 %v549, %v555
      %v589 = vmax.f32 %v557, 0.0
      %v590 = vmax.f32 %v558, 0.0
      %v591 = vmax.f32 %v559, 0.0
      %v592 = vmax.f32 %v560, 0.0
      %v593 = vmax.f32 %v561, 0.0
      %v594 = vmax.f32 %v562, 0.0
      %v595 = vmax.f32 %v563, 0.0
      %v596 = vmax.f32 %v564, 0.0
      %v597 = vmax.f32 %v565, 0.0
      %v598 = vmax.f32 %v566, 0.0
      %v599 = vmax.f32 %v567, 0.0
      %v600 = vmax.f32 %v568, 0.0
      %v601 = vmax.f32 %v569, 0.0
      %v602 = vmax.f32 %v570, 0.0
      %v603 = vmax.f32 %v571, 0.0
      %v604 = vmax.f32 %v572, 0.0
      %v605 = vmax.f32 %v573, 0.0
      %v606 = vmax.f32 %v574, 0.0
      %v607 = vmax.f32 %v575, 0.0
      %v608 = vmax.f32 %v576, 0.0
      %v609 = vmax.f32 %v577, 0.0
      %v610 = vmax.f32 %v578, 0.0
      %v611 = vmax.f32 %v579, 0.0
      %v612 = vmax.f32 %v580, 0.0
      %v613 = vmax.f32 %v581, 0.0
      %v614 = vmax.f32 %v582, 0.0
      %v615 = vmax.f32 %v583, 0.0
      %v616 = vmax.f32 %v584, 0.0
      %v617 = vmax.f32 %v585, 0.0
      %v618 = vmax.f32 %v586, 0.0
      %v619 = vmax.f32 %v587, 0.0
      %v620 = vmax.f32 %v588, 0.0
      %v621 = vld [vmem:[#allocation8] sm:$0xff]
      %v622 = vld [vmem:[#allocation8 + $0x8] sm:$0xff]
      %v623 = vld [vmem:[#allocation8 + $0x10] sm:$0xff]
      %v624 = vld [vmem:[#allocation8 + $0x18] sm:$0xff]
      %v625 = vld [vmem:[#allocation8 + $0x20] sm:$0xff]
      %v626 = vld [vmem:[#allocation8 + $0x28] sm:$0xff]
      %v627 = vld [vmem:[#allocation8 + $0x30] sm:$0xff]
      %v628 = vld [vmem:[#allocation8 + $0x38] sm:$0xff]
      %v629 = vld [vmem:[#allocation8 + $0x40] sm:$0xff]
      %v630 = vld [vmem:[#allocation8 + $0x48] sm:$0xff]
      %v631 = vld [vmem:[#allocation8 + $0x50] sm:$0xff]
      %v632 = vld [vmem:[#allocation8 + $0x58] sm:$0xff]
      %v633 = vld [vmem:[#allocation8 + $0x60] sm:$0xff]
      %v634 = vld [vmem:[#allocation8 + $0x68] sm:$0xff]
      %v635 = vld [vmem:[#allocation8 + $0x70] sm:$0xff]
      %v636 = vld [vmem:[#allocation8 + $0x78] sm:$0xff]
      %v637 = vld [vmem:[%s4] sm:$0x1]
      %v639 = vlaneseq
      %v640 = vshrl.u32 %v639, 7
      %v641 = vsub.s32 0, %v640
      %v642 = vrot.slane %v637, %v641
      %644 = vmatprep.subr.mxu0 0.0
      %645 = vmatpush1.msra.mxu0 %v621
      %646 = vmatprep.subr.mxu0 0.0
      %647 = vmatpush1.msra.mxu0 %v622
      %648 = vmatprep.subr.mxu0 0.0
      %649 = vmatpush1.msra.mxu0 %v623
      %650 = vmatprep.subr.mxu0 0.0
      %651 = vmatpush1.msra.mxu0 %v624
      %652 = vmatprep.subr.mxu0 0.0
      %653 = vmatpush1.msra.mxu0 %v625
      %654 = vmatprep.subr.mxu0 0.0
      %655 = vmatpush1.msra.mxu0 %v626
      %656 = vmatprep.subr.mxu0 0.0
      %657 = vmatpush1.msra.mxu0 %v627
      %658 = vmatprep.subr.mxu0 0.0
      %659 = vmatpush1.msra.mxu0 %v628
      %660 = vmatprep.subr.mxu0 0.0
      %661 = vmatpush1.msra.mxu0 %v629
      %662 = vmatprep.subr.mxu0 0.0
      %663 = vmatpush1.msra.mxu0 %v630
      %664 = vmatprep.subr.mxu0 0.0
      %665 = vmatpush1.msra.mxu0 %v631
      %666 = vmatprep.subr.mxu0 0.0
      %667 = vmatpush1.msra.mxu0 %v632
      %668 = vmatprep.subr.mxu0 0.0
      %669 = vmatpush1.msra.mxu0 %v633
      %670 = vmatprep.subr.mxu0 0.0
      %671 = vmatpush1.msra.mxu0 %v634
      %672 = vmatprep.subr.mxu0 0.0
      %673 = vmatpush1.msra.mxu0 %v635
      %674 = vmatprep.subr.mxu0 0.0
      %675 = vmatpush1.msra.mxu0 %v636
      %676 = vmatprep.subr.mxu0 0.0
      %677 = vmatpush1.msra.mxu0 0.0
      %678 = vmatprep.subr.mxu0 0.0
      %679 = vmatpush1.msra.mxu0 0.0
      %680 = vmatprep.subr.mxu0 0.0
      %681 = vmatpush1.msra.mxu0 0.0
      %682 = vmatprep.subr.mxu0 0.0
      %683 = vmatpush1.msra.mxu0 0.0
      %684 = vmatprep.subr.mxu0 0.0
      %685 = vmatpush1.msra.mxu0 0.0
      %686 = vmatprep.subr.mxu0 0.0
      %687 = vmatpush1.msra.mxu0 0.0
      %688 = vmatprep.subr.mxu0 0.0
      %689 = vmatpush1.msra.mxu0 0.0
      %690 = vmatprep.subr.mxu0 0.0
      %691 = vmatpush1.msra.mxu0 0.0
      %692 = vmatprep.subr.mxu0 0.0
      %693 = vmatpush1.msra.mxu0 0.0
      %694 = vmatprep.subr.mxu0 0.0
      %695 = vmatpush1.msra.mxu0 0.0
      %696 = vmatprep.subr.mxu0 0.0
      %697 = vmatpush1.msra.mxu0 0.0
      %698 = vmatprep.subr.mxu0 0.0
      %699 = vmatpush1.msra.mxu0 0.0
      %700 = vmatprep.subr.mxu0 0.0
      %701 = vmatpush1.msra.mxu0 0.0
      %702 = vmatprep.subr.mxu0 0.0
      %703 = vmatpush1.msra.mxu0 0.0
      %704 = vmatprep.subr.mxu0 0.0
      %705 = vmatpush1.msra.mxu0 0.0
      %706 = vmatprep.subr.mxu0 0.0
      %707 = vmatpush1.msra.mxu0 0.0
      %708 = vmatprep.mubr.f32.mxu0 0.0
      %709 = vmatmul.mubr.f32.gmra.mrb[0].mxu0 %v589
      %v710 = vpop.f32.mrb[0].mxu0
      %v711 = vadd.f32 %v642, %v710
      %v712 = vpop.f32.mrb[0].mxu0
      %713 = vmatprep.mubr.f32.mxu0 0.0
      %714 = vmatmul.mubr.f32.gmra.mrb[0].mxu0 %v590
      %v715 = vpop.f32.mrb[0].mxu0
      %v716 = vadd.f32 %v642, %v715
      %v717 = vpop.f32.mrb[0].mxu0
      %718 = vmatprep.mubr.f32.mxu0 0.0
      %719 = vmatmul.mubr.f32.gmra.mrb[0].mxu0 %v591
      %v720 = vpop.f32.mrb[0].mxu0
      %v721 = vadd.f32 %v642, %v720
      %v722 = vpop.f32.mrb[0].mxu0
      %723 = vmatprep.mubr.f32.mxu0 0.0
      %724 = vmatmul.mubr.f32.gmra.mrb[0].mxu0 %v592
      %v725 = vpop.f32.mrb[0].mxu0
      %v726 = vadd.f32 %v642, %v725
      %v727 = vpop.f32.mrb[0].mxu0
      %728 = vmatprep.mubr.f32.mxu0 0.0
      %729 = vmatmul.mubr.f32.gmra.mrb[0].mxu0 %v593
      %v730 = vpop.f32.mrb[0].mxu0
      %v731 = vadd.f32 %v642, %v730
      %v732 = vpop.f32.mrb[0].mxu0
      %733 = vmatprep.mubr.f32.mxu0 0.0
      %734 = vmatmul.mubr.f32.gmra.mrb[0].mxu0 %v594
      %v735 = vpop.f32.mrb[0].mxu0
      %v736 = vadd.f32 %v642, %v735
      %v737 = vpop.f32.mrb[0].mxu0
      %738 = vmatprep.mubr.f32.mxu0 0.0
      %739 = vmatmul.mubr.f32.gmra.mrb[0].mxu0 %v595
      %v740 = vpop.f32.mrb[0].mxu0
      %v741 = vadd.f32 %v642, %v740
      %v742 = vpop.f32.mrb[0].mxu0
      %743 = vmatprep.mubr.f32.mxu0 0.0
      %744 = vmatmul.mubr.f32.gmra.mrb[0].mxu0 %v596
      %v745 = vpop.f32.mrb[0].mxu0
      %v746 = vadd.f32 %v642, %v745
      %v747 = vpop.f32.mrb[0].mxu0
      %748 = vmatprep.mubr.f32.mxu0 0.0
      %749 = vmatmul.mubr.f32.gmra.mrb[0].mxu0 %v597
      %v750 = vpop.f32.mrb[0].mxu0
      %v751 = vadd.f32 %v642, %v750
      %v752 = vpop.f32.mrb[0].mxu0
      %753 = vmatprep.mubr.f32.mxu0 0.0
      %754 = vmatmul.mubr.f32.gmra.mrb[0].mxu0 %v598
      %v755 = vpop.f32.mrb[0].mxu0
      %v756 = vadd.f32 %v642, %v755
      %v757 = vpop.f32.mrb[0].mxu0
      %758 = vmatprep.mubr.f32.mxu0 0.0
      %759 = vmatmul.mubr.f32.gmra.mrb[0].mxu0 %v599
      %v760 = vpop.f32.mrb[0].mxu0
      %v761 = vadd.f32 %v642, %v760
      %v762 = vpop.f32.mrb[0].mxu0
      %763 = vmatprep.mubr.f32.mxu0 0.0
      %764 = vmatmul.mubr.f32.gmra.mrb[0].mxu0 %v600
      %v765 = vpop.f32.mrb[0].mxu0
      %v766 = vadd.f32 %v642, %v765
      %v767 = vpop.f32.mrb[0].mxu0
      %768 = vmatprep.mubr.f32.mxu0 0.0
      %769 = vmatmul.mubr.f32.gmra.mrb[0].mxu0 %v601
      %v770 = vpop.f32.mrb[0].mxu0
      %v771 = vadd.f32 %v642, %v770
      %v772 = vpop.f32.mrb[0].mxu0
      %773 = vmatprep.mubr.f32.mxu0 0.0
      %774 = vmatmul.mubr.f32.gmra.mrb[0].mxu0 %v602
      %v775 = vpop.f32.mrb[0].mxu0
      %v776 = vadd.f32 %v642, %v775
      %v777 = vpop.f32.mrb[0].mxu0
      %778 = vmatprep.mubr.f32.mxu0 0.0
      %779 = vmatmul.mubr.f32.gmra.mrb[0].mxu0 %v603
      %v780 = vpop.f32.mrb[0].mxu0
      %v781 = vadd.f32 %v642, %v780
      %v782 = vpop.f32.mrb[0].mxu0
      %783 = vmatprep.mubr.f32.mxu0 0.0
      %784 = vmatmul.mubr.f32.gmra.mrb[0].mxu0 %v604
      %v785 = vpop.f32.mrb[0].mxu0
      %v786 = vadd.f32 %v642, %v785
      %v787 = vpop.f32.mrb[0].mxu0
      %788 = vmatprep.mubr.f32.mxu0 0.0
      %789 = vmatmul.mubr.f32.gmra.mrb[0].mxu0 %v605
      %v790 = vpop.f32.mrb[0].mxu0
      %v791 = vadd.f32 %v642, %v790
      %v792 = vpop.f32.mrb[0].mxu0
      %793 = vmatprep.mubr.f32.mxu0 0.0
      %794 = vmatmul.mubr.f32.gmra.mrb[0].mxu0 %v606
      %v795 = vpop.f32.mrb[0].mxu0
      %v796 = vadd.f32 %v642, %v795
      %v797 = vpop.f32.mrb[0].mxu0
      %798 = vmatprep.mubr.f32.mxu0 0.0
      %799 = vmatmul.mubr.f32.gmra.mrb[0].mxu0 %v607
      %v800 = vpop.f32.mrb[0].mxu0
      %v801 = vadd.f32 %v642, %v800
      %v802 = vpop.f32.mrb[0].mxu0
      %803 = vmatprep.mubr.f32.mxu0 0.0
      %804 = vmatmul.mubr.f32.gmra.mrb[0].mxu0 %v608
      %v805 = vpop.f32.mrb[0].mxu0
      %v806 = vadd.f32 %v642, %v805
      %v807 = vpop.f32.mrb[0].mxu0
      %808 = vmatprep.mubr.f32.mxu0 0.0
      %809 = vmatmul.mubr.f32.gmra.mrb[0].mxu0 %v609
      %v810 = vpop.f32.mrb[0].mxu0
      %v811 = vadd.f32 %v642, %v810
      %v812 = vpop.f32.mrb[0].mxu0
      %813 = vmatprep.mubr.f32.mxu0 0.0
      %814 = vmatmul.mubr.f32.gmra.mrb[0].mxu0 %v610
      %v815 = vpop.f32.mrb[0].mxu0
      %v816 = vadd.f32 %v642, %v815
      %v817 = vpop.f32.mrb[0].mxu0
      %818 = vmatprep.mubr.f32.mxu0 0.0
      %819 = vmatmul.mubr.f32.gmra.mrb[0].mxu0 %v611
      %v820 = vpop.f32.mrb[0].mxu0
      %v821 = vadd.f32 %v642, %v820
      %v822 = vpop.f32.mrb[0].mxu0
      %823 = vmatprep.mubr.f32.mxu0 0.0
      %824 = vmatmul.mubr.f32.gmra.mrb[0].mxu0 %v612
      %v825 = vpop.f32.mrb[0].mxu0
      %v826 = vadd.f32 %v642, %v825
      %v827 = vpop.f32.mrb[0].mxu0
      %828 = vmatprep.mubr.f32.mxu0 0.0
      %829 = vmatmul.mubr.f32.gmra.mrb[0].mxu0 %v613
      %v830 = vpop.f32.mrb[0].mxu0
      %v831 = vadd.f32 %v642, %v830
      %v832 = vpop.f32.mrb[0].mxu0
      %833 = vmatprep.mubr.f32.mxu0 0.0
      %834 = vmatmul.mubr.f32.gmra.mrb[0].mxu0 %v614
      %v835 = vpop.f32.mrb[0].mxu0
      %v836 = vadd.f32 %v642, %v835
      %v837 = vpop.f32.mrb[0].mxu0
      %838 = vmatprep.mubr.f32.mxu0 0.0
      %839 = vmatmul.mubr.f32.gmra.mrb[0].mxu0 %v615
      %v840 = vpop.f32.mrb[0].mxu0
      %v841 = vadd.f32 %v642, %v840
      %v842 = vpop.f32.mrb[0].mxu0
      %843 = vmatprep.mubr.f32.mxu0 0.0
      %844 = vmatmul.mubr.f32.gmra.mrb[0].mxu0 %v616
      %v845 = vpop.f32.mrb[0].mxu0
      %v846 = vadd.f32 %v642, %v845
      %v847 = vpop.f32.mrb[0].mxu0
      %848 = vmatprep.mubr.f32.mxu0 0.0
      %849 = vmatmul.mubr.f32.gmra.mrb[0].mxu0 %v617
      %v850 = vpop.f32.mrb[0].mxu0
      %v851 = vadd.f32 %v642, %v850
      %v852 = vpop.f32.mrb[0].mxu0
      %853 = vmatprep.mubr.f32.mxu0 0.0
      %854 = vmatmul.mubr.f32.gmra.mrb[0].mxu0 %v618
      %v855 = vpop.f32.mrb[0].mxu0
      %v856 = vadd.f32 %v642, %v855
      %v857 = vpop.f32.mrb[0].mxu0
      %858 = vmatprep.mubr.f32.mxu0 0.0
      %859 = vmatmul.mubr.f32.gmra.mrb[0].mxu0 %v619
      %v860 = vpop.f32.mrb[0].mxu0
      %v861 = vadd.f32 %v642, %v860
      %v862 = vpop.f32.mrb[0].mxu0
      %863 = vmatprep.mubr.f32.mxu0 0.0
      %864 = vmatmul.mubr.f32.gmra.mrb[0].mxu0 %v620
      %v865 = vpop.f32.mrb[0].mxu0
      %v866 = vadd.f32 %v642, %v865
      %v867 = vpop.f32.mrb[0].mxu0
      %868 = vdwg.mxu0
      %869 = vst [vmem:[#allocation9] sm:$0xff] %v711
      %870 = vst [vmem:[#allocation9 + $0x8] sm:$0xff] %v716
      %871 = vst [vmem:[#allocation9 + $0x10] sm:$0xff] %v721
      %872 = vst [vmem:[#allocation9 + $0x18] sm:$0xff] %v726
      %873 = vst [vmem:[#allocation9 + $0x20] sm:$0xff] %v731
      %874 = vst [vmem:[#allocation9 + $0x28] sm:$0xff] %v736
      %875 = vst [vmem:[#allocation9 + $0x30] sm:$0xff] %v741
      %876 = vst [vmem:[#allocation9 + $0x38] sm:$0xff] %v746
      %877 = vst [vmem:[#allocation9 + $0x40] sm:$0xff] %v751
      %878 = vst [vmem:[#allocation9 + $0x48] sm:$0xff] %v756
      %879 = vst [vmem:[#allocation9 + $0x50] sm:$0xff] %v761
      %880 = vst [vmem:[#allocation9 + $0x58] sm:$0xff] %v766
      %881 = vst [vmem:[#allocation9 + $0x60] sm:$0xff] %v771
      %882 = vst [vmem:[#allocation9 + $0x68] sm:$0xff] %v776
      %883 = vst [vmem:[#allocation9 + $0x70] sm:$0xff] %v781
      %884 = vst [vmem:[#allocation9 + $0x78] sm:$0xff] %v786
      %885 = vst [vmem:[#allocation9 + $0x80] sm:$0xff] %v791
      %886 = vst [vmem:[#allocation9 + $0x88] sm:$0xff] %v796
      %887 = vst [vmem:[#allocation9 + $0x90] sm:$0xff] %v801
      %888 = vst [vmem:[#allocation9 + $0x98] sm:$0xff] %v806
      %889 = vst [vmem:[#allocation9 + $0xa0] sm:$0xff] %v811
      %890 = vst [vmem:[#allocation9 + $0xa8] sm:$0xff] %v816
      %891 = vst [vmem:[#allocation9 + $0xb0] sm:$0xff] %v821
      %892 = vst [vmem:[#allocation9 + $0xb8] sm:$0xff] %v826
      %893 = vst [vmem:[#allocation9 + $0xc0] sm:$0xff] %v831
      %894 = vst [vmem:[#allocation9 + $0xc8] sm:$0xff] %v836
      %895 = vst [vmem:[#allocation9 + $0xd0] sm:$0xff] %v841
      %896 = vst [vmem:[#allocation9 + $0xd8] sm:$0xff] %v846
      %897 = vst [vmem:[#allocation9 + $0xe0] sm:$0xff] %v851
      %898 = vst [vmem:[#allocation9 + $0xe8] sm:$0xff] %v856
      %899 = vst [vmem:[#allocation9 + $0xf0] sm:$0xff] %v861
      %900 = vst [vmem:[#allocation9 + $0xf8] sm:$0xff] %v866
    $region41: #{tpu_custom_call.1} parent=1 // pred_fallthru
      _
    // Predicated region
    $region42: #{tpu_custom_call.1} parent=1 // pred_check
      _
    $region43: #{tpu_custom_call.1} parent=1 // pred_check_branch
      %902 = sbr.rel (0) target = $region45
    $region44: #{tpu_custom_call.1} parent=1 // pred_region
      %s904 = ssub.s32 4096, 4096
      %905 = vsyncadd [#allocation5], %s904
      %s906 = sshll.u32 [#allocation9], 4
      %s907 = int_to_ptr.vmem [resolvable:$true] %s906
      %912 = dma.vmem_to_hbm [thread:$0]  %s907, 4096, %s5, [#allocation5], 128, 128, 8
    $region45: #{tpu_custom_call.1} parent=1 // pred_fallthru
      _
    // Predicated region
    $region46: #{tpu_custom_call.1} parent=1 // pred_check
      _
    $region47: #{tpu_custom_call.1} parent=1 // pred_check_branch
      %914 = sbr.rel (0) target = $region49
    $region48: #{tpu_custom_call.1} parent=1 // pred_region
      %915 = dma.done [#allocation5], 4096
    $region49: #{tpu_custom_call.1} parent=1 // pred_fallthru
      _
    %916 = vsyncpa [#allocation4], 1
    %917 = vsyncpa [#allocation7], 1
    %918 = vsyncpa [#allocation5], 1

</llo_original>
